<compile_context>
chip_gen: v6e
topology: v6e:2x2x1
jax: 0.10.0
libtpu: 0.0.40
codegen_flags: <defaults>
</compile_context>

<pallas_src>
import jax
import jax.numpy as jnp
from jax.experimental import pallas as pl
from jax.experimental.pallas import tpu as pltpu


def hard_constraint_kernel(pts_ref, w1t_ref, b1_ref, w2_ref, b2_ref, out_ref):
    # pts_ref: (D_IN, TM)   w1t: (H, D_IN)   b1: (H, 1)
    # w2:      (H, D_OUT)   b2:  (D_OUT, 1)  out: (D_OUT, TM)
    x = pts_ref[0:1, :]                      # (1, TM) first input coordinate
    t = pts_ref[1:2, :]                      # (1, TM) second input coordinate
    w1t = w1t_ref[...]                       # (H, D_IN)

    # --- inner model (MLP) ---
    # Layer 1: K=2 contraction done as two lane-dense VPU FMAs (no MXU):
    #   h[j, n] = tanh(w1t[j,0] * x[n] + w1t[j,1] * t[n] + b1[j])
    pre = w1t[:, 0:1] * x + w1t[:, 1:2] * t + b1_ref[...]        # (H, TM)
    hidden = jnp.tanh(pre)                                        # EUP, dense

    # Layer 2: H -> D_OUT(=1) contraction as mul + sublane-sum (VPU + XLU).
    u = jnp.sum(w2_ref[...] * hidden, axis=0, keepdims=True) + b2_ref[...]

    # --- constraint(points.join(model_out).coordinates): u_hard = x(1-x)u ---
    out_ref[...] = (x * (1.0 - x) * u).astype(out_ref.dtype)


def _pick_batch_tile(n, tm_max=2048):
    """Lane tile for the batch dim: multiple of 128; keep >=2 grid steps
    when possible so v7x can shard the 'parallel' axis over both TCs."""
    n_lane = ((n + 127) // 128) * 128
    tm = min(tm_max, max(128, (n_lane // 2 // 128) * 128))
    return tm


def hard_constraint_forward(points_t, w1, b1, w2, b2, *, tm=None):
    """points_t: (D_IN, N) row-major (batch on lanes). Returns (D_OUT, N)."""
    d_in, n = points_t.shape
    h_dim = w1.shape[1]
    d_out = w2.shape[1]
    assert d_in == 2 and d_out == 1, "synthetic instantiation: 2 inputs, 1 output"

    if tm is None:
        tm = _pick_batch_tile(n)
    n_pad = pl.cdiv(n, tm) * tm
    if n_pad != n:
        # ragged batch: zero-pad lanes; padded columns are sliced off below
        points_t = jnp.pad(points_t, ((0, 0), (0, n_pad - n)))

    w1t = w1.T                               # (H, D_IN)  per-input column vectors
    b1_col = b1.reshape(h_dim, 1)            # (H, 1)     folded into the FMA chain
    b2_col = b2.reshape(d_out, 1)            # (D_OUT, 1)

    dsize = points_t.dtype.itemsize
    cost = pl.CostEstimate(
        flops=int(n_pad * (2 * h_dim * d_in + 2 * h_dim * d_out + 4)),
        transcendentals=int(n_pad * h_dim),
        bytes_accessed=int(
            (points_t.size + n_pad * d_out) * dsize
            + (w1.size + b1.size + w2.size + b2.size) * dsize
        ),
    )

    out = pl.pallas_call(
        hard_constraint_kernel,
        out_shape=jax.ShapeDtypeStruct((d_out, n_pad), points_t.dtype),
        grid_spec=pltpu.PrefetchScalarGridSpec(
            num_scalar_prefetch=0,
            grid=(n_pad // tm,),
            in_specs=[
                # points: lane-dense batch tile, marches along the grid
                pl.BlockSpec((d_in, tm), lambda i: (0, i)),
                # weights/biases: resident (same block every step, no re-DMA)
                pl.BlockSpec((h_dim, d_in), lambda i: (0, 0)),
                pl.BlockSpec((h_dim, 1), lambda i: (0, 0)),
                pl.BlockSpec((h_dim, d_out), lambda i: (0, 0)),
                pl.BlockSpec((d_out, 1), lambda i: (0, 0)),
            ],
            # lane-dense output tile -> unmasked full-width stores + fat writeback DMA
            out_specs=pl.BlockSpec((d_out, tm), lambda i: (0, i)),
        ),
        compiler_params=pltpu.CompilerParams(
            dimension_semantics=("parallel",),
        ),
        cost_estimate=cost,
    )(points_t, w1t, b1_col, w2, b2_col)

    return out[:, :n]


def hard_constraint_reference(points_t, w1, b1, w2, b2):
    # pure-JAX reference of the same forward (model -> join -> constraint)
    pts = points_t.T                                              # (N, D_IN)
    hp = jnp.tanh(jnp.dot(pts, w1, precision=jax.lax.Precision.HIGHEST) + b1)
    u = jnp.dot(hp, w2, precision=jax.lax.Precision.HIGHEST) + b2
    x = pts[:, 0:1]
    return (x * (1.0 - x) * u).T                                  # (D_OUT, N)


if __name__ == "__main__":
    key = jax.random.PRNGKey(0)
    k_pts, k_w1, k_b1, k_w2, k_b2 = jax.random.split(key, 5)

    # ragged N exercises the zero-pad tail path; tile auto-picks 512 -> 2 grid steps
    N, D_IN, HIDDEN, D_OUT = 1000, 2, 32, 1

    points_t = jax.random.uniform(k_pts, (D_IN, N), dtype=jnp.float32)
    w1 = jax.random.normal(k_w1, (D_IN, HIDDEN), dtype=jnp.float32) * 0.5
    b1 = jax.random.normal(k_b1, (HIDDEN,), dtype=jnp.float32) * 0.1
    w2 = jax.random.normal(k_w2, (HIDDEN, D_OUT), dtype=jnp.float32) * 0.5
    b2 = jax.random.normal(k_b2, (D_OUT,), dtype=jnp.float32) * 0.1

    out = hard_constraint_forward(points_t, w1, b1, w2, b2)
    out = jax.block_until_ready(out)

    ref = hard_constraint_reference(points_t, w1, b1, w2, b2)
    assert out.shape == (D_OUT, N)
    assert jnp.allclose(out, ref, atol=1e-5, rtol=1e-5)

    print("KERNEL_OK")
</pallas_src>

<mosaic_0001>
module attributes {stable_mosaic.version = 11 : i64} {
  func.func @hard_constraint_kernel(%arg0: i32, %arg1: memref<2x512xf32, #tpu.memory_space<vmem>>, %arg2: memref<32x2xf32, #tpu.memory_space<vmem>>, %arg3: memref<32x1xf32, #tpu.memory_space<vmem>>, %arg4: memref<32x1xf32, #tpu.memory_space<vmem>>, %arg5: memref<1x1xf32, #tpu.memory_space<vmem>>, %arg6: memref<1x512xf32, #tpu.memory_space<vmem>>) attributes {dimension_semantics = [#tpu.dimension_semantics<parallel>], iteration_bounds = array<i64: 2>, scalar_prefetch = 0 : i64, scratch_operands = 0 : i64, tpu.core_type = #tpu.core_type<tc>, window_params = [{transform_indices = @transform_0, window_bounds = array<i64: 2, 512>}, {pipeline_mode = #tpu.pipeline_mode<synchronous>, transform_indices = @transform_1, window_bounds = array<i64: 32, 2>}, {pipeline_mode = #tpu.pipeline_mode<synchronous>, transform_indices = @transform_2, window_bounds = array<i64: 32, 1>}, {pipeline_mode = #tpu.pipeline_mode<synchronous>, transform_indices = @transform_3, window_bounds = array<i64: 32, 1>}, {pipeline_mode = #tpu.pipeline_mode<synchronous>, transform_indices = @transform_4, window_bounds = array<i64: 1, 1>}, {transform_indices = @transform_5, window_bounds = array<i64: 1, 512>}]} {
    %c0 = arith.constant 0 : index
    %c0_0 = arith.constant 0 : index
    %0 = vector.load %arg1[%c0, %c0_0] : memref<2x512xf32, #tpu.memory_space<vmem>>, vector<1x512xf32>
    %c1 = arith.constant 1 : index
    %c0_1 = arith.constant 0 : index
    %1 = vector.load %arg1[%c1, %c0_1] : memref<2x512xf32, #tpu.memory_space<vmem>>, vector<1x512xf32>
    %c0_2 = arith.constant 0 : index
    %c0_3 = arith.constant 0 : index
    %2 = vector.load %arg2[%c0_2, %c0_3] : memref<32x2xf32, #tpu.memory_space<vmem>>, vector<32x2xf32>
    %3 = vector.extract_strided_slice %2 {offsets = [0, 0], sizes = [32, 1], strides = [1, 1]} : vector<32x2xf32> to vector<32x1xf32>
    %4 = vector.broadcast %3 : vector<32x1xf32> to vector<32x512xf32>
    %5 = vector.broadcast %0 : vector<1x512xf32> to vector<32x512xf32>
    %6 = arith.mulf %4, %5 : vector<32x512xf32>
    %7 = vector.extract_strided_slice %2 {offsets = [0, 1], sizes = [32, 1], strides = [1, 1]} : vector<32x2xf32> to vector<32x1xf32>
    %8 = vector.broadcast %7 : vector<32x1xf32> to vector<32x512xf32>
    %9 = vector.broadcast %1 : vector<1x512xf32> to vector<32x512xf32>
    %10 = arith.mulf %8, %9 : vector<32x512xf32>
    %11 = arith.addf %6, %10 : vector<32x512xf32>
    %c0_4 = arith.constant 0 : index
    %c0_5 = arith.constant 0 : index
    %12 = vector.load %arg3[%c0_4, %c0_5] : memref<32x1xf32, #tpu.memory_space<vmem>>, vector<32x1xf32>
    %13 = vector.broadcast %12 : vector<32x1xf32> to vector<32x512xf32>
    %14 = arith.addf %11, %13 : vector<32x512xf32>
    %15 = math.tanh %14 : vector<32x512xf32>
    %c0_6 = arith.constant 0 : index
    %c0_7 = arith.constant 0 : index
    %16 = vector.load %arg4[%c0_6, %c0_7] : memref<32x1xf32, #tpu.memory_space<vmem>>, vector<32x1xf32>
    %17 = vector.broadcast %16 : vector<32x1xf32> to vector<32x512xf32>
    %18 = arith.mulf %17, %15 : vector<32x512xf32>
    %cst = arith.constant dense<0.000000e+00> : vector<512xf32>
    %19 = vector.multi_reduction <add>, %18, %cst [0] : vector<32x512xf32> to vector<512xf32>
    %20 = vector.shape_cast %19 : vector<512xf32> to vector<1x512xf32>
    %c0_8 = arith.constant 0 : index
    %c0_9 = arith.constant 0 : index
    %21 = vector.load %arg5[%c0_8, %c0_9] : memref<1x1xf32, #tpu.memory_space<vmem>>, vector<1x1xf32>
    %22 = vector.broadcast %21 : vector<1x1xf32> to vector<1x512xf32>
    %23 = arith.addf %20, %22 : vector<1x512xf32>
    %cst_10 = arith.constant 1.000000e+00 : f32
    %24 = vector.broadcast %cst_10 : f32 to vector<1x512xf32>
    %25 = arith.subf %24, %0 : vector<1x512xf32>
    %26 = arith.mulf %0, %25 : vector<1x512xf32>
    %27 = arith.mulf %26, %23 : vector<1x512xf32>
    %c0_11 = arith.constant 0 : index
    %c0_12 = arith.constant 0 : index
    %28 = vector.load %arg6[%c0_11, %c0_12] : memref<1x512xf32, #tpu.memory_space<vmem>>, vector<1x512xf32>
    tpu.vector_store %arg6[%c0_11, %c0_12], %27 {strides = array<i32>} : memref<1x512xf32, #tpu.memory_space<vmem>>, vector<1x512xf32>,
    return
  }
  func.func @transform_0(%arg0: i32) -> (i32, i32) {
    %c0_i32 = arith.constant 0 : i32
    %c0_i32_0 = arith.constant 0 : i32
    return %c0_i32, %arg0 : i32, i32
  }
  func.func @transform_1(%arg0: i32) -> (i32, i32) {
    %c0_i32 = arith.constant 0 : i32
    %c0_i32_0 = arith.constant 0 : i32
    %c0_i32_1 = arith.constant 0 : i32
    return %c0_i32, %c0_i32_0 : i32, i32
  }
  func.func @transform_2(%arg0: i32) -> (i32, i32) {
    %c0_i32 = arith.constant 0 : i32
    %c0_i32_0 = arith.constant 0 : i32
    %c0_i32_1 = arith.constant 0 : i32
    return %c0_i32, %c0_i32_0 : i32, i32
  }
  func.func @transform_3(%arg0: i32) -> (i32, i32) {
    %c0_i32 = arith.constant 0 : i32
    %c0_i32_0 = arith.constant 0 : i32
    %c0_i32_1 = arith.constant 0 : i32
    return %c0_i32, %c0_i32_0 : i32, i32
  }
  func.func @transform_4(%arg0: i32) -> (i32, i32) {
    %c0_i32 = arith.constant 0 : i32
    %c0_i32_0 = arith.constant 0 : i32
    %c0_i32_1 = arith.constant 0 : i32
    return %c0_i32, %c0_i32_0 : i32, i32
  }
  func.func @transform_5(%arg0: i32) -> (i32, i32) {
    %c0_i32 = arith.constant 0 : i32
    %c0_i32_0 = arith.constant 0 : i32
    return %c0_i32, %arg0 : i32, i32
  }
}

</mosaic_0001>

<llo_original>
// kernel: tpu_custom_call.1
$region0: #{tpu_custom_call.1}
  #allocation0 [shape = 'u32[]', space=smem, size = 0x4, offset = 0x4, fixed_abs, tag = 'smem constant byte address 0x4 - core index']
  #allocation1 [shape = 'u32[144,128]{1,0:T(1,128)}', space=vmem, size = 0x12000, scoped, tag = 'internal scratch']
  #allocation2 [shape = 'f32[1,1]{1,0:T(1,128)S(1)}', space=vmem, size = 0x200, scoped, tag = 'scoped memory for tpu_custom_call.1']
  %s0 = inlined_call_operand.vmem [shape: f32[2,1024], index: 0, kind: input, shape index: {}]
  %s1 = inlined_call_operand.vmem [shape: f32[32,2], index: 1, kind: input, shape index: {}]
  %s2 = inlined_call_operand.vmem [shape: f32[32,1], index: 2, kind: input, shape index: {}]
  %s3 = inlined_call_operand.vmem [shape: f32[32,1], index: 3, kind: input, shape index: {}]
  %s4 = inlined_call_operand.<no memory space> [shape: f32[1,1], index: 4, kind: input, shape index: {}]
  %s5 = inlined_call_operand.hbm [shape: f32[1,1024], index: 5, kind: output, shape index: {}]
  %s6 = sld [smem:[#allocation0]]
  $region53: #{tpu_custom_call.1} parent=0
    _
  %s8 = ssub.s32 1, %s6
  %s9 = scalar_select 0, %s8, %s6
  %v10 = vstv %s4
  %11 = vst [vmem:[#allocation2] sm:$0x1] %v10
  $region1: #{tpu_custom_call.1} parent=0
    #allocation3 [shape = 'u8[4096]{0}', space=vmem, size = 0x1000, scoped, tag = 'output window, operand 0']
    #allocation4 [shape = 's32[2]{0}', space=sflag, size = 0x8, scoped, tag = 'scoped memory for tpu_custom_call.1']
    %12 = vsyncpa [#allocation4], 0
    %s13 = scalar_lea.sflag [#allocation4], 1
    %14 = vsyncpa %s13, 0
    loop: start=0, step=1, limit=4
    $region2: #{tpu_custom_call.1} parent=1 // loop_pre_header
      _
    $region3: #{tpu_custom_call.1} parent=1 // loop_header
      %s16 = sphi 0, %s20
      %p17 = scmp.ge.s32.totalorder %s16, 4
      %s26 = sphi 0, %s28
      %s29 = sphi 0, %s26
      %s30 = sphi 0, %s29
      %s46 = sphi 0, %s30
      %s50 = sphi 0, %s50
      %s52 = sphi 0, %s50
      %s53 = sphi 0, %s52
      %s67 = sphi 0, %s53
      %s71 = sphi 0, %s71
      %s73 = sphi 0, %s71
      %s74 = sphi 0, %s73
      %s88 = sphi 0, %s74
      %s92 = sphi 0, %s92
      %s94 = sphi 0, %s92
      %s95 = sphi 0, %s94
      %s109 = sphi 0, %s95
      %s113 = sphi 0, %s113
      %s115 = sphi 0, %s113
      %s116 = sphi 0, %s115
      %s130 = sphi 0, %s116
      %s136 = sphi 0, %s138
      %s139 = sphi 0, %s136
      %s140 = sphi 0, %s139
      %s156 = sphi 0, %s140
    $region4: #{tpu_custom_call.1} parent=1 // loop_header_branch
      %19 = sbr.rel (%p17) target = $region8
    $region5: #{tpu_custom_call.1} parent=1 // loop_body
      %s21 = ssub.s32 %s16, 1
      %s22 = ssub.s32 %s16, 2
      %s23 = sadd.s32 %s16, 1
      %s24 = ssub.s32 %s16, %s23
      %p25 = scmp.eq.s32.totalorder %s24, 0
      %s27 = sadd.s32 %s26, 1
      %s28 = scalar_select %p25, %s26, %s27
      %p31 = pneg %p25
      %p32 = scmp.eq.s32.totalorder %s16, 1
      %p33 = por %p31, %p32
      %p34 = scmp.ne.s32.totalorder %s26, %s29
      %p35 = scmp.eq.s32.totalorder %s16, 0
      %p36 = por %p34, %p35
      %p37 = scmp.ne.s32.totalorder %s26, %s29
      %p38 = scmp.eq.s32.totalorder %s21, 1
      %p39 = por %p37, %p38
      %p40 = scmp.ne.s32.totalorder %s29, %s30
      %p41 = scmp.eq.s32.totalorder %s21, 0
      %p42 = por %p40, %p41
      %p43 = scmp.ne.s32.totalorder %s29, %s30
      %p44 = scmp.eq.s32.totalorder %s22, 1
      %p45 = por %p43, %p44
      %p47 = scmp.ne.s32.totalorder %s30, %s46
      %p48 = scmp.eq.s32.totalorder %s22, 0
      %p49 = por %p47, %p48
      %s51 = sadd.s32 %s50, 1
      %p54 = scmp.eq.s32.totalorder %s16, 1
      %p55 = scmp.ne.s32.totalorder %s50, %s52
      %p56 = scmp.eq.s32.totalorder %s16, 0
      %p57 = por %p55, %p56
      %p58 = scmp.ne.s32.totalorder %s50, %s52
      %p59 = scmp.eq.s32.totalorder %s21, 1
      %p60 = por %p58, %p59
      %p61 = scmp.ne.s32.totalorder %s52, %s53
      %p62 = scmp.eq.s32.totalorder %s21, 0
      %p63 = por %p61, %p62
      %p64 = scmp.ne.s32.totalorder %s52, %s53
      %p65 = scmp.eq.s32.totalorder %s22, 1
      %p66 = por %p64, %p65
      %p68 = scmp.ne.s32.totalorder %s53, %s67
      %p69 = scmp.eq.s32.totalorder %s22, 0
      %p70 = por %p68, %p69
      %s72 = sadd.s32 %s71, 1
      %p75 = scmp.eq.s32.totalorder %s16, 1
      %p76 = scmp.ne.s32.totalorder %s71, %s73
      %p77 = scmp.eq.s32.totalorder %s16, 0
      %p78 = por %p76, %p77
      %p79 = scmp.ne.s32.totalorder %s71, %s73
      %p80 = scmp.eq.s32.totalorder %s21, 1
      %p81 = por %p79, %p80
      %p82 = scmp.ne.s32.totalorder %s73, %s74
      %p83 = scmp.eq.s32.totalorder %s21, 0
      %p84 = por %p82, %p83
      %p85 = scmp.ne.s32.totalorder %s73, %s74
      %p86 = scmp.eq.s32.totalorder %s22, 1
      %p87 = por %p85, %p86
      %p89 = scmp.ne.s32.totalorder %s74, %s88
      %p90 = scmp.eq.s32.totalorder %s22, 0
      %p91 = por %p89, %p90
      %s93 = sadd.s32 %s92, 1
      %p96 = scmp.eq.s32.totalorder %s16, 1
      %p97 = scmp.ne.s32.totalorder %s92, %s94
      %p98 = scmp.eq.s32.totalorder %s16, 0
      %p99 = por %p97, %p98
      %p100 = scmp.ne.s32.totalorder %s92, %s94
      %p101 = scmp.eq.s32.totalorder %s21, 1
      %p102 = por %p100, %p101
      %p103 = scmp.ne.s32.totalorder %s94, %s95
      %p104 = scmp.eq.s32.totalorder %s21, 0
      %p105 = por %p103, %p104
      %p106 = scmp.ne.s32.totalorder %s94, %s95
      %p107 = scmp.eq.s32.totalorder %s22, 1
      %p108 = por %p106, %p107
      %p110 = scmp.ne.s32.totalorder %s95, %s109
      %p111 = scmp.eq.s32.totalorder %s22, 0
      %p112 = por %p110, %p111
      %s114 = sadd.s32 %s113, 1
      %p117 = scmp.eq.s32.totalorder %s16, 1
      %p118 = scmp.ne.s32.totalorder %s113, %s115
      %p119 = scmp.eq.s32.totalorder %s16, 0
      %p120 = por %p118, %p119
      %p121 = scmp.ne.s32.totalorder %s113, %s115
      %p122 = scmp.eq.s32.totalorder %s21, 1
      %p123 = por %p121, %p122
      %p124 = scmp.ne.s32.totalorder %s115, %s116
      %p125 = scmp.eq.s32.totalorder %s21, 0
      %p126 = por %p124, %p125
      %p127 = scmp.ne.s32.totalorder %s115, %s116
      %p128 = scmp.eq.s32.totalorder %s22, 1
      %p129 = por %p127, %p128
      %p131 = scmp.ne.s32.totalorder %s116, %s130
      %p132 = scmp.eq.s32.totalorder %s22, 0
      %p133 = por %p131, %p132
      %s134 = ssub.s32 %s16, %s23
      %p135 = scmp.eq.s32.totalorder %s134, 0
      %s137 = sadd.s32 %s136, 1
      %s138 = scalar_select %p135, %s136, %s137
      %p141 = pneg %p135
      %p142 = scmp.eq.s32.totalorder %s16, 1
      %p143 = por %p141, %p142
      %p144 = scmp.ne.s32.totalorder %s136, %s139
      %p145 = scmp.eq.s32.totalorder %s16, 0
      %p146 = por %p144, %p145
      %p147 = scmp.ne.s32.totalorder %s136, %s139
      %p148 = scmp.eq.s32.totalorder %s21, 1
      %p149 = por %p147, %p148
      %p150 = scmp.ne.s32.totalorder %s139, %s140
      %p151 = scmp.eq.s32.totalorder %s21, 0
      %p152 = por %p150, %p151
      %p153 = scmp.ne.s32.totalorder %s139, %s140
      %p154 = scmp.eq.s32.totalorder %s22, 1
      %p155 = por %p153, %p154
      %p157 = scmp.ne.s32.totalorder %s140, %s156
      %p158 = scmp.eq.s32.totalorder %s22, 0
      %p159 = por %p157, %p158
      %p160 = scmp.le.s32.totalorder 1, %s16
      %p161 = scmp.lt.s32.totalorder %s16, 3
      %p162 = pnand %p160, %p161
      %p163 = pneg %p162
      // Predicated region
      $region9: #{tpu_custom_call.1} parent=5 // pred_check
        _
      $region10: #{tpu_custom_call.1} parent=5 // pred_check_branch
        %165 = sbr.rel (%p162) target = $region12
      $region11: #{tpu_custom_call.1} parent=5 // pred_region
        %s166 = ssub.s32 %s16, 1
        // Predicated region
        $region13: #{tpu_custom_call.1} parent=11 // pred_check
          %p167 = pneg %p63
        $region14: #{tpu_custom_call.1} parent=11 // pred_check_branch
          %169 = sbr.rel (%p167) target = $region16
        $region15: #{tpu_custom_call.1} parent=11 // pred_region
          _
        $region16: #{tpu_custom_call.1} parent=11 // pred_fallthru
          _
        // Predicated region
        $region17: #{tpu_custom_call.1} parent=11 // pred_check
          %p170 = pneg %p84
        $region18: #{tpu_custom_call.1} parent=11 // pred_check_branch
          %172 = sbr.rel (%p170) target = $region20
        $region19: #{tpu_custom_call.1} parent=11 // pred_region
          _
        $region20: #{tpu_custom_call.1} parent=11 // pred_fallthru
          _
        // Predicated region
        $region21: #{tpu_custom_call.1} parent=11 // pred_check
          %p173 = pneg %p105
        $region22: #{tpu_custom_call.1} parent=11 // pred_check_branch
          %175 = sbr.rel (%p173) target = $region24
        $region23: #{tpu_custom_call.1} parent=11 // pred_region
          _
        $region24: #{tpu_custom_call.1} parent=11 // pred_fallthru
          _
        // Predicated region
        $region25: #{tpu_custom_call.1} parent=11 // pred_check
          %p176 = pneg %p126
        $region26: #{tpu_custom_call.1} parent=11 // pred_check_branch
          %178 = sbr.rel (%p176) target = $region28
        $region27: #{tpu_custom_call.1} parent=11 // pred_region
          _
        $region28: #{tpu_custom_call.1} parent=11 // pred_fallthru
          _
      $region12: #{tpu_custom_call.1} parent=5 // pred_fallthru
        _
      %p179 = scmp.lt.s32.totalorder %s16, 2
      // Predicated region
      $region29: #{tpu_custom_call.1} parent=5 // pred_check
        %p180 = pneg %p179
      $region30: #{tpu_custom_call.1} parent=5 // pred_check_branch
        %182 = sbr.rel (%p180) target = $region32
      $region31: #{tpu_custom_call.1} parent=5 // pred_region
        // Predicated region
        $region33: #{tpu_custom_call.1} parent=31 // pred_check
          %p183 = pneg %p36
        $region34: #{tpu_custom_call.1} parent=31 // pred_check_branch
          %185 = sbr.rel (%p183) target = $region36
        $region35: #{tpu_custom_call.1} parent=31 // pred_region
          %s186 = smul.u32 4, %s16
          %p187 = scmp.lt.s32.totalorder %s186, 7
          %s188 = scalar_select %p187, %s186, 7
          %s189 = smul.addr %s188, 2
          %s190 = scalar_lea.vmem %s0, %s189
          %s191 = smul.u32 4, %s16
        $region36: #{tpu_custom_call.1} parent=31 // pred_fallthru
          _
      $region32: #{tpu_custom_call.1} parent=5 // pred_fallthru
        _
      %p192 = scmp.le.s32.totalorder 1, %s16
      %p193 = scmp.lt.s32.totalorder %s16, 3
      %p194 = pnand %p192, %p193
      %p195 = pneg %p194
      // Predicated region
      $region37: #{tpu_custom_call.1} parent=5 // pred_check
        _
      $region38: #{tpu_custom_call.1} parent=5 // pred_check_branch
        %197 = sbr.rel (%p194) target = $region40
      $region39: #{tpu_custom_call.1} parent=5 // pred_region
        %s198 = ssub.s32 %s16, 1
        %s199 = smul.u32 4, %s21
        %p200 = scmp.lt.s32.totalorder %s199, 7
        %s201 = scalar_select %p200, %s199, 7
        %s202 = smul.addr %s201, 2
        %s203 = scalar_lea.vmem %s0, %s202
        %p204 = pneg %p42
        %p205 = pneg %p39
        %p206 = pneg %p63
        %p207 = pneg %p60
        %p208 = pneg %p84
        %p209 = pneg %p81
        %p210 = pneg %p105
        %p211 = pneg %p102
        %p212 = pneg %p126
        %p213 = pneg %p123
        %p214 = pneg %p152
        %p215 = pneg %p149
        %s216 = sand.u32 %s139, 1
        %s217 = scalar_lea.sflag [#allocation4], %s216
        %s218 = sand.u32 %s139, 1
        %s219 = smul.addr %s218, 4
        %s220 = scalar_lea.vmem [#allocation3], %s219
        %s221 = smul.u32 4, %s21
        %p222 = scmp.lt.s32.totalorder %s221, 7
        %s223 = scalar_select %p222, %s221, 7
        %s224 = smul.addr %s223, 2
        %s225 = scalar_lea.vmem %s0, %s224
        %s226 = smul.u32 4, %s21
        %s227 = smul.u32 4, %s21
        %v228 = vld [vmem:[%s225] ss:$2 sm:$0xf]
        %s229 = scalar_lea.vmem %s225, 1
        %v230 = vld [vmem:[%s229] ss:$2 sm:$0xf]
        %v231 = vld [vmem:[%s1] sm:$0xff]
        %v232 = vld [vmem:[%s1 + $0x8] sm:$0xff]
        %v233 = vld [vmem:[%s1 + $0x10] sm:$0xff]
        %v234 = vld [vmem:[%s1 + $0x18] sm:$0xff]
        %236 = vset.pattern.permute.xlu0 0
        %237 = vperm.xlu0 %236, %v231
        %v238 = vpop.permute.xlu0 %237
        %241 = vset.pattern.permute.xlu0 0
        %242 = vperm.xlu0 %241, %v232
        %v243 = vpop.permute.xlu0 %242
        %246 = vset.pattern.permute.xlu0 0
        %247 = vperm.xlu0 %246, %v233
        %v248 = vpop.permute.xlu0 %247
        %251 = vset.pattern.permute.xlu0 0
        %252 = vperm.xlu0 %251, %v234
        %v253 = vpop.permute.xlu0 %252
        %v256 = vlaneseq
        %v257 = vshrl.u32 %v256, 7
        %v258 = vsub.s32 0, %v257
        %v259 = vrot.slane %v228, %v258
        %v260 = vlaneseq
        %v261 = vshrl.u32 %v260, 7
        %v262 = vsub.s32 1, %v261
        %v263 = vrot.slane %v228, %v262
        %v264 = vlaneseq
        %v265 = vshrl.u32 %v264, 7
        %v266 = vsub.s32 2, %v265
        %v267 = vrot.slane %v228, %v266
        %v268 = vlaneseq
        %v269 = vshrl.u32 %v268, 7
        %v270 = vsub.s32 3, %v269
        %v271 = vrot.slane %v228, %v270
        %v276 = vmul.f32 %v238, %v259
        %v277 = vmul.f32 %v238, %v263
        %v278 = vmul.f32 %v238, %v267
        %v279 = vmul.f32 %v238, %v271
        %v280 = vmul.f32 %v243, %v259
        %v281 = vmul.f32 %v243, %v263
        %v282 = vmul.f32 %v243, %v267
        %v283 = vmul.f32 %v243, %v271
        %v284 = vmul.f32 %v248, %v259
        %v285 = vmul.f32 %v248, %v263
        %v286 = vmul.f32 %v248, %v267
        %v287 = vmul.f32 %v248, %v271
        %v288 = vmul.f32 %v253, %v259
        %v289 = vmul.f32 %v253, %v263
        %v290 = vmul.f32 %v253, %v267
        %v291 = vmul.f32 %v253, %v271
        %292 = vset.pattern.permute.xlu0 1
        %293 = vperm.xlu0 %292, %v231
        %v294 = vpop.permute.xlu0 %293
        %296 = vset.pattern.permute.xlu0 1
        %297 = vperm.xlu0 %296, %v232
        %v298 = vpop.permute.xlu0 %297
        %300 = vset.pattern.permute.xlu0 1
        %301 = vperm.xlu0 %300, %v233
        %v302 = vpop.permute.xlu0 %301
        %304 = vset.pattern.permute.xlu0 1
        %305 = vperm.xlu0 %304, %v234
        %v306 = vpop.permute.xlu0 %305
        %v309 = vlaneseq
        %v310 = vshrl.u32 %v309, 7
        %v311 = vsub.s32 0, %v310
        %v312 = vrot.slane %v230, %v311
        %v313 = vlaneseq
        %v314 = vshrl.u32 %v313, 7
        %v315 = vsub.s32 1, %v314
        %v316 = vrot.slane %v230, %v315
        %v317 = vlaneseq
        %v318 = vshrl.u32 %v317, 7
        %v319 = vsub.s32 2, %v318
        %v320 = vrot.slane %v230, %v319
        %v321 = vlaneseq
        %v322 = vshrl.u32 %v321, 7
        %v323 = vsub.s32 3, %v322
        %v324 = vrot.slane %v230, %v323
        %v329 = vmul.f32 %v294, %v312
        %v330 = vmul.f32 %v294, %v316
        %v331 = vmul.f32 %v294, %v320
        %v332 = vmul.f32 %v294, %v324
        %v333 = vmul.f32 %v298, %v312
        %v334 = vmul.f32 %v298, %v316
        %v335 = vmul.f32 %v298, %v320
        %v336 = vmul.f32 %v298, %v324
        %v337 = vmul.f32 %v302, %v312
        %v338 = vmul.f32 %v302, %v316
        %v339 = vmul.f32 %v302, %v320
        %v340 = vmul.f32 %v302, %v324
        %v341 = vmul.f32 %v306, %v312
        %v342 = vmul.f32 %v306, %v316
        %v343 = vmul.f32 %v306, %v320
        %v344 = vmul.f32 %v306, %v324
        %v345 = vadd.f32 %v276, %v329
        %v346 = vadd.f32 %v277, %v330
        %v347 = vadd.f32 %v278, %v331
        %v348 = vadd.f32 %v279, %v332
        %v349 = vadd.f32 %v280, %v333
        %v350 = vadd.f32 %v281, %v334
        %v351 = vadd.f32 %v282, %v335
        %v352 = vadd.f32 %v283, %v336
        %v353 = vadd.f32 %v284, %v337
        %v354 = vadd.f32 %v285, %v338
        %v355 = vadd.f32 %v286, %v339
        %v356 = vadd.f32 %v287, %v340
        %v357 = vadd.f32 %v288, %v341
        %v358 = vadd.f32 %v289, %v342
        %v359 = vadd.f32 %v290, %v343
        %v360 = vadd.f32 %v291, %v344
        %v361 = vld [vmem:[%s2] sm:$0xff]
        %v362 = vld [vmem:[%s2 + $0x8] sm:$0xff]
        %v363 = vld [vmem:[%s2 + $0x10] sm:$0xff]
        %v364 = vld [vmem:[%s2 + $0x18] sm:$0xff]
        %366 = vset.pattern.permute.xlu0 0
        %367 = vperm.xlu0 %366, %v361
        %v368 = vpop.permute.xlu0 %367
        %371 = vset.pattern.permute.xlu0 0
        %372 = vperm.xlu0 %371, %v362
        %v373 = vpop.permute.xlu0 %372
        %376 = vset.pattern.permute.xlu0 0
        %377 = vperm.xlu0 %376, %v363
        %v378 = vpop.permute.xlu0 %377
        %381 = vset.pattern.permute.xlu0 0
        %382 = vperm.xlu0 %381, %v364
        %v383 = vpop.permute.xlu0 %382
        %v385 = vadd.f32 %v345, %v368
        %v386 = vadd.f32 %v346, %v368
        %v387 = vadd.f32 %v347, %v368
        %v388 = vadd.f32 %v348, %v368
        %v389 = vadd.f32 %v349, %v373
        %v390 = vadd.f32 %v350, %v373
        %v391 = vadd.f32 %v351, %v373
        %v392 = vadd.f32 %v352, %v373
        %v393 = vadd.f32 %v353, %v378
        %v394 = vadd.f32 %v354, %v378
        %v395 = vadd.f32 %v355, %v378
        %v396 = vadd.f32 %v356, %v378
        %v397 = vadd.f32 %v357, %v383
        %v398 = vadd.f32 %v358, %v383
        %v399 = vadd.f32 %v359, %v383
        %v400 = vadd.f32 %v360, %v383
        %v401 = vtanh.pop %v385
        %v402 = vtanh.pop %v386
        %v403 = vtanh.pop %v387
        %v404 = vtanh.pop %v388
        %v405 = vtanh.pop %v389
        %v406 = vtanh.pop %v390
        %v407 = vtanh.pop %v391
        %v408 = vtanh.pop %v392
        %v409 = vtanh.pop %v393
        %v410 = vtanh.pop %v394
        %v411 = vtanh.pop %v395
        %v412 = vtanh.pop %v396
        %v413 = vtanh.pop %v397
        %v414 = vtanh.pop %v398
        %v415 = vtanh.pop %v399
        %v416 = vtanh.pop %v400
        %v417 = vld [vmem:[%s3] sm:$0xff]
        %v418 = vld [vmem:[%s3 + $0x8] sm:$0xff]
        %v419 = vld [vmem:[%s3 + $0x10] sm:$0xff]
        %v420 = vld [vmem:[%s3 + $0x18] sm:$0xff]
        %422 = vset.pattern.permute.xlu0 0
        %423 = vperm.xlu0 %422, %v417
        %v424 = vpop.permute.xlu0 %423
        %427 = vset.pattern.permute.xlu0 0
        %428 = vperm.xlu0 %427, %v418
        %v429 = vpop.permute.xlu0 %428
        %432 = vset.pattern.permute.xlu0 0
        %433 = vperm.xlu0 %432, %v419
        %v434 = vpop.permute.xlu0 %433
        %437 = vset.pattern.permute.xlu0 0
        %438 = vperm.xlu0 %437, %v420
        %v439 = vpop.permute.xlu0 %438
        %v441 = vmul.f32 %v424, %v401
        %v442 = vmul.f32 %v424, %v402
        %v443 = vmul.f32 %v424, %v403
        %v444 = vmul.f32 %v424, %v404
        %v445 = vmul.f32 %v429, %v405
        %v446 = vmul.f32 %v429, %v406
        %v447 = vmul.f32 %v429, %v407
        %v448 = vmul.f32 %v429, %v408
        %v449 = vmul.f32 %v434, %v409
        %v450 = vmul.f32 %v434, %v410
        %v451 = vmul.f32 %v434, %v411
        %v452 = vmul.f32 %v434, %v412
        %v453 = vmul.f32 %v439, %v413
        %v454 = vmul.f32 %v439, %v414
        %v455 = vmul.f32 %v439, %v415
        %v456 = vmul.f32 %v439, %v416
        %v457 = vadd.f32 %v441, %v445
        %v458 = vadd.f32 %v457, %v449
        %v459 = vadd.f32 %v458, %v453
        %v460 = vrot.slane %v459, 4
        %v461 = vadd.f32 %v459, %v460
        %v462 = vrot.slane %v461, 2
        %v463 = vadd.f32 %v461, %v462
        %v464 = vrot.slane %v463, 1
        %v465 = vadd.f32 %v463, %v464
        %v466 = vadd.f32 %v442, %v446
        %v467 = vadd.f32 %v466, %v450
        %v468 = vadd.f32 %v467, %v454
        %v469 = vrot.slane %v468, 4
        %v470 = vadd.f32 %v468, %v469
        %v471 = vrot.slane %v470, 2
        %v472 = vadd.f32 %v470, %v471
        %v473 = vrot.slane %v472, 1
        %v474 = vadd.f32 %v472, %v473
        %v475 = vadd.f32 %v443, %v447
        %v476 = vadd.f32 %v475, %v451
        %v477 = vadd.f32 %v476, %v455
        %v478 = vrot.slane %v477, 4
        %v479 = vadd.f32 %v477, %v478
        %v480 = vrot.slane %v479, 2
        %v481 = vadd.f32 %v479, %v480
        %v482 = vrot.slane %v481, 1
        %v483 = vadd.f32 %v481, %v482
        %v484 = vadd.f32 %v444, %v448
        %v485 = vadd.f32 %v484, %v452
        %v486 = vadd.f32 %v485, %v456
        %v487 = vrot.slane %v486, 4
        %v488 = vadd.f32 %v486, %v487
        %v489 = vrot.slane %v488, 2
        %v490 = vadd.f32 %v488, %v489
        %v491 = vrot.slane %v490, 1
        %v492 = vadd.f32 %v490, %v491
        %v493 = vld [vmem:[#allocation2] sm:$0x1]
        %495 = vset.pattern.permute.xlu0 0
        %496 = vperm.xlu0 %495, %v493
        %v497 = vpop.permute.xlu0 %496
        %v499 = vlaneseq
        %v500 = vshrl.u32 %v499, 7
        %v501 = vsub.s32 0, %v500
        %v502 = vrot.slane %v497, %v501
        %v503 = vadd.f32 %v465, %v502
        %v504 = vadd.f32 %v474, %v502
        %v505 = vadd.f32 %v483, %v502
        %v506 = vadd.f32 %v492, %v502
        %v507 = vsub.f32 1.0, %v228
        %v508 = vmul.f32 %v228, %v507
        %v513 = vcombine.low %v503, %v504
        %v514 = vcombine.low %v505, %v506
        %v516 = vunpack.c.l.s4 1966171168
        %v517 = vunpack.c.0.s8 %v516
        %v518 = vlaneseq
        %v519 = vshrl.u32 %v518, 7
        %v520 = vsub.s32 %v517, %v519
        %v521 = vrot.slane %v513, %v520
        %v523 = vunpack.c.l.s4 1966171168
        %v524 = vunpack.c.0.s8 %v523
        %v525 = vlaneseq
        %v526 = vshrl.u32 %v525, 7
        %v527 = vsub.s32 %v524, %v526
        %v528 = vrot.slane %v514, %v527
        %v529 = vcombine.low %v521, %v528
        %v531 = vunpack.c.l.s4 1966171168
        %v532 = vunpack.c.0.s8 %v531
        %v533 = vlaneseq
        %v534 = vshrl.u32 %v533, 7
        %v535 = vsub.s32 %v532, %v534
        %v536 = vrot.slane %v529, %v535
        %v538 = vmul.f32 %v508, %v536
        %v539 = vlaneseq
        %vm540 = vcmp.ge.s32.totalorder %v539, 0
        %vm541 = vcmp.lt.s32.totalorder %v539, 512
        %vm542 = vmand %vm540, %vm541
        %543 = vst.msk [vmem:[%s220] sm:$0xf] %vm542, %v538
        %s544 = sand.u32 %s139, 1
        %s545 = scalar_lea.sflag [#allocation4], %s544
        %s546 = sand.u32 %s139, 1
        %s547 = smul.addr %s546, 4
        %s548 = scalar_lea.vmem [#allocation3], %s547
        // Predicated region
        $region41: #{tpu_custom_call.1} parent=39 // pred_check
          %p549 = pneg %p149
        $region42: #{tpu_custom_call.1} parent=39 // pred_check_branch
          %551 = sbr.rel (%p549) target = $region44
        $region43: #{tpu_custom_call.1} parent=39 // pred_region
          %s552 = smul.u32 4, %s21
          %s554 = ssub.s32 64, 64
          %555 = vsyncadd %s545, %s554
          %s556 = smul.addr %s552, 16
          %s557 = scalar_lea.hbm %s5, %s556
          %s559 = sshll.u32 %s548, 4
          %s560 = int_to_ptr.vmem [resolvable:$true] %s559
          %562 = dma.vmem_to_hbm [thread:$0]  %s560, 64, %s557, %s545
        $region44: #{tpu_custom_call.1} parent=39 // pred_fallthru
          _
      $region40: #{tpu_custom_call.1} parent=5 // pred_fallthru
        _
      %p563 = scmp.le.s32.totalorder 2, %s16
      // Predicated region
      $region45: #{tpu_custom_call.1} parent=5 // pred_check
        %p564 = pneg %p563
      $region46: #{tpu_custom_call.1} parent=5 // pred_check_branch
        %566 = sbr.rel (%p564) target = $region48
      $region47: #{tpu_custom_call.1} parent=5 // pred_region
        %s567 = ssub.s32 %s16, 2
        // Predicated region
        $region49: #{tpu_custom_call.1} parent=47 // pred_check
          %p568 = pneg %p155
        $region50: #{tpu_custom_call.1} parent=47 // pred_check_branch
          %570 = sbr.rel (%p568) target = $region52
        $region51: #{tpu_custom_call.1} parent=47 // pred_region
          %s571 = sand.u32 %s140, 1
          %s572 = scalar_lea.sflag [#allocation4], %s571
          %s573 = sand.u32 %s140, 1
          %s574 = smul.addr %s573, 4
          %s575 = scalar_lea.vmem [#allocation3], %s574
          %576 = dma.done %s572, 64
        $region52: #{tpu_custom_call.1} parent=47 // pred_fallthru
          _
      $region48: #{tpu_custom_call.1} parent=5 // pred_fallthru
        _
    $region6: #{tpu_custom_call.1} parent=1 // loop_footer
      %s20 = sadd.s32 1, %s16
    $region7: #{tpu_custom_call.1} parent=1 // loop_footer_branch
      %15 = sbr.rel target = $region3
    $region8: #{tpu_custom_call.1} parent=1 // loop_exit
      _
    %577 = vsyncpa [#allocation4], 1
    %s578 = scalar_lea.sflag [#allocation4], 1
    %579 = vsyncpa %s578, 1

</llo_original>
